<compile_context>
chip_gen: v6e
topology: v6e:2x2x1
jax: 0.10.0
libtpu: 0.0.40
codegen_flags: <defaults>
</compile_context>

<pallas_src>
import functools
import math

import jax
import jax.numpy as jnp
from jax.experimental import pallas as pl
from jax.experimental.pallas import tpu as pltpu


def _round_up(x, m):
    return ((x + m - 1) // m) * m


def _vmem_limit_bytes():
    """Scoped-VMEM limit: ~3/4 of physical VMEM, capped at 96 MiB.

    v5e/v6e have 128 MiB physical -> 96 MiB; v7x has 64 MiB -> 48 MiB.
    Falls back to the conservative v7x value if the query is unavailable.
    """
    cap = 64 * 1024 * 1024
    try:
        info = pltpu.get_tpu_info()
        cap = int(getattr(info, "vmem_capacity_bytes", cap) or cap)
    except Exception:
        pass
    return min((cap * 3) // 4, 96 * 1024 * 1024)


def _choose_block_b(B, S, H, in_itemsize, out_itemsize, vmem_budget_bytes):
    """Pick the batch-block size TB from a padded-layout VMEM budget.

    Accounts for (8,128)-tile padding of every block, double buffering of the
    pipelined inputs/outputs, and ~2 in-kernel (S, H) broadcast-product
    temporaries per row (so the estimate tracks real VMEM use, not raw bytes).
    """
    sub = 8 if in_itemsize >= 4 else (16 if in_itemsize == 2 else 32)
    s_pad = _round_up(S, sub)      # sublane padding of the (S, H) slabs
    h_pad = _round_up(H, 128)      # lane padding
    s_lane = _round_up(S, 128)     # soft output / scores: S is the lane axis
    per_row = (
        2 * (2 * s_pad * h_pad * in_itemsize        # K, V blocks (double-buffered)
             + h_pad * in_itemsize                  # q block
             + h_pad * out_itemsize                 # att_out block
             + s_lane * out_itemsize)               # soft block
        + 2 * s_pad * h_pad * max(in_itemsize, 2)   # broadcast-product temporaries
        + 2 * s_lane * 4                            # f32 scores / soft temporaries
    )
    tb = max(1, vmem_budget_bytes // per_row)
    tb = min(tb, 1024, B)
    if B > 8:
        # Guarantee >= ~4 grid steps (>= 2 per v7x TensorCore) so the pipeline
        # always has a next K/V block to prefetch against.
        tb = min(tb, max(8, pl.cdiv(B, 4)))
    if tb < B:
        # Non-final blocks: keep the sublane (second-to-last) dim of the
        # (TB, H) / (TB, S) blocks a multiple of 8.
        tb = min(B, max(8, (tb // 8) * 8))
    return max(int(tb), 1)


def _fold_lane_sum_last(prod):
    """Sum over the last (lane) axis, accumulating in f32.

    For H a multiple of 128 (and > 128), 128-lane groups are first folded with
    cheap VPU adds over vreg-aligned static slices (no relayout), leaving one
    cross-lane (XLU) reduce per row.
    """
    h = prod.shape[-1]
    if h > 128 and h % 128 == 0:
        acc = prod[..., :128].astype(jnp.float32)
        for g in range(1, h // 128):
            acc = acc + prod[..., g * 128:(g + 1) * 128]
        return jnp.sum(acc, axis=-1)
    return jnp.sum(prod, axis=-1, dtype=jnp.float32)


def _attention_kernel(q_ref, k_ref, v_ref, out_ref, soft_ref, *, scale):
    # Per-grid-step views (TB batch rows):
    #   q_ref: (TB, H), k_ref/v_ref: (TB, S, H), out_ref: (TB, H), soft_ref: (TB, S)
    # Fold the scale into q once; keep K/V in their input dtype (no whole-block
    # f32 copies), accumulate reductions in f32.
    q = (q_ref[...].astype(jnp.float32) * scale).astype(k_ref.dtype)   # (TB, H)

    # scaled scores[b, s] = <keys[b, s, :], scale * query[b, :]>  -> (TB, S) f32
    scores = _fold_lane_sum_last(k_ref[...] * q[:, None, :])

    # Numerically stable softmax over the sequence axis (PyTorch dim=1).
    m = jnp.max(scores, axis=-1, keepdims=True)                         # (TB, 1)
    e = jnp.exp(scores - m)                                             # (TB, S)
    denom = jnp.sum(e, axis=-1, keepdims=True)                          # (TB, 1)
    soft = e * pl.reciprocal(denom, approx=False)                       # (TB, S)

    # att_out[b, h] = sum_s values[b, s, h] * soft[b, s]  -> (TB, H), f32 acc.
    w = soft.astype(v_ref.dtype)
    att = jnp.sum(v_ref[...] * w[:, :, None], axis=1, dtype=jnp.float32)

    out_ref[...] = att.astype(out_ref.dtype)
    soft_ref[...] = soft.astype(soft_ref.dtype)


def attention(query, keys, values, *, block_b=None):
    """query: [B, H], keys: [B, S, H], values: [B, S, H] -> (att_out, soft)."""
    B, H = query.shape
    _, S, _ = keys.shape
    scale = math.sqrt(float(H))  # np.sqrt(query.shape[1]) in the PyTorch module

    vmem_limit = _vmem_limit_bytes()
    in_itemsize = jnp.dtype(keys.dtype).itemsize
    out_itemsize = jnp.dtype(query.dtype).itemsize
    if block_b is None:
        block_b = _choose_block_b(B, S, H, in_itemsize, out_itemsize,
                                  vmem_budget_bytes=vmem_limit // 3)
    block_b = max(1, min(int(block_b), B))
    grid = (pl.cdiv(B, block_b),)

    kernel = functools.partial(_attention_kernel, scale=scale)

    att_out, soft = pl.pallas_call(
        kernel,
        out_shape=(
            jax.ShapeDtypeStruct((B, H), query.dtype),
            jax.ShapeDtypeStruct((B, S), query.dtype),
        ),
        grid_spec=pltpu.PrefetchScalarGridSpec(
            num_scalar_prefetch=0,
            grid=grid,
            in_specs=[
                pl.BlockSpec((block_b, H), lambda b: (b, 0)),
                pl.BlockSpec((block_b, S, H), lambda b: (b, 0, 0)),
                pl.BlockSpec((block_b, S, H), lambda b: (b, 0, 0)),
            ],
            out_specs=[
                pl.BlockSpec((block_b, H), lambda b: (b, 0)),
                pl.BlockSpec((block_b, S), lambda b: (b, 0)),
            ],
        ),
        compiler_params=pltpu.CompilerParams(
            dimension_semantics=("parallel",),
            vmem_limit_bytes=vmem_limit,
        ),
    )(query, keys, values)
    return att_out, soft


def _reference(query, keys, values):
    # Pure-JAX reference mirroring the PyTorch forward.
    scale = math.sqrt(float(query.shape[1]))
    scores = jnp.einsum("bsh,bh->bs", keys, query)
    soft = jax.nn.softmax(scores * scale, axis=1)
    att_out = jnp.einsum("bsh,bs->bh", values, soft)
    return att_out, soft


if __name__ == "__main__":
    B, S, H = 2, 8, 32
    key = jax.random.PRNGKey(0)
    kq, kk, kv = jax.random.split(key, 3)
    query = jax.random.normal(kq, (B, H), dtype=jnp.float32)
    keys = jax.random.normal(kk, (B, S, H), dtype=jnp.float32)
    values = jax.random.normal(kv, (B, S, H), dtype=jnp.float32)

    att_out, soft = attention(query, keys, values)
    jax.block_until_ready((att_out, soft))

    ref_out, ref_soft = _reference(query, keys, values)
    assert att_out.shape == (B, H) and soft.shape == (B, S)
    assert jnp.allclose(att_out, ref_out, atol=1e-4, rtol=1e-4)
    assert jnp.allclose(soft, ref_soft, atol=2e-5, rtol=1e-4)

    print("KERNEL_OK")
</pallas_src>

<mosaic_0001>
module attributes {stable_mosaic.version = 11 : i64} {
  func.func @_attention_kernel(%arg0: i32, %arg1: memref<2x32xf32, #tpu.memory_space<vmem>>, %arg2: memref<2x8x32xf32, #tpu.memory_space<vmem>>, %arg3: memref<2x8x32xf32, #tpu.memory_space<vmem>>, %arg4: memref<2x32xf32, #tpu.memory_space<vmem>>, %arg5: memref<2x8xf32, #tpu.memory_space<vmem>>) attributes {dimension_semantics = [#tpu.dimension_semantics<parallel>], iteration_bounds = array<i64: 1>, scalar_prefetch = 0 : i64, scratch_operands = 0 : i64, tpu.core_type = #tpu.core_type<tc>, window_params = [{transform_indices = @transform_0, window_bounds = array<i64: 2, 32>}, {transform_indices = @transform_1, window_bounds = array<i64: 2, 8, 32>}, {transform_indices = @transform_2, window_bounds = array<i64: 2, 8, 32>}, {transform_indices = @transform_3, window_bounds = array<i64: 2, 32>}, {transform_indices = @transform_4, window_bounds = array<i64: 2, 8>}]} {
    %c0 = arith.constant 0 : index
    %c0_0 = arith.constant 0 : index
    %0 = vector.load %arg1[%c0, %c0_0] : memref<2x32xf32, #tpu.memory_space<vmem>>, vector<2x32xf32>
    %cst = arith.constant 5.65685415 : f32
    %1 = vector.broadcast %cst : f32 to vector<2x32xf32>
    %2 = arith.mulf %0, %1 : vector<2x32xf32>
    %c0_1 = arith.constant 0 : index
    %c0_2 = arith.constant 0 : index
    %c0_3 = arith.constant 0 : index
    %3 = vector.load %arg2[%c0_1, %c0_2, %c0_3] : memref<2x8x32xf32, #tpu.memory_space<vmem>>, vector<2x8x32xf32>
    %4 = vector.shape_cast %2 : vector<2x32xf32> to vector<2x1x32xf32>
    %5 = vector.broadcast %4 : vector<2x1x32xf32> to vector<2x8x32xf32>
    %6 = arith.mulf %3, %5 : vector<2x8x32xf32>
    %cst_4 = arith.constant dense<0.000000e+00> : vector<2x8xf32>
    %7 = vector.multi_reduction <add>, %6, %cst_4 [2] : vector<2x8x32xf32> to vector<2x8xf32>
    %cst_5 = arith.constant dense<0xFF800000> : vector<2xf32>
    %8 = vector.multi_reduction <maximumf>, %7, %cst_5 [1] : vector<2x8xf32> to vector<2xf32>
    %9 = vector.shape_cast %8 : vector<2xf32> to vector<2x1xf32>
    %10 = vector.broadcast %9 : vector<2x1xf32> to vector<2x8xf32>
    %11 = arith.subf %7, %10 : vector<2x8xf32>
    %12 = math.exp %11 : vector<2x8xf32>
    %cst_6 = arith.constant dense<0.000000e+00> : vector<2xf32>
    %13 = vector.multi_reduction <add>, %12, %cst_6 [1] : vector<2x8xf32> to vector<2xf32>
    %14 = vector.shape_cast %13 : vector<2xf32> to vector<2x1xf32>
    %15 = tpu.reciprocal %14 : vector<2x1xf32> -> vector<2x1xf32>
    %16 = vector.broadcast %15 : vector<2x1xf32> to vector<2x8xf32>
    %17 = arith.mulf %12, %16 : vector<2x8xf32>
    %c0_7 = arith.constant 0 : index
    %c0_8 = arith.constant 0 : index
    %c0_9 = arith.constant 0 : index
    %18 = vector.load %arg3[%c0_7, %c0_8, %c0_9] : memref<2x8x32xf32, #tpu.memory_space<vmem>>, vector<2x8x32xf32>
    %19 = vector.shape_cast %17 : vector<2x8xf32> to vector<2x8x1xf32>
    %20 = vector.broadcast %19 : vector<2x8x1xf32> to vector<2x8x32xf32>
    %21 = arith.mulf %18, %20 : vector<2x8x32xf32>
    %cst_10 = arith.constant dense<0.000000e+00> : vector<2x32xf32>
    %22 = vector.multi_reduction <add>, %21, %cst_10 [1] : vector<2x8x32xf32> to vector<2x32xf32>
    %c0_11 = arith.constant 0 : index
    %c0_12 = arith.constant 0 : index
    %23 = vector.load %arg4[%c0_11, %c0_12] : memref<2x32xf32, #tpu.memory_space<vmem>>, vector<2x32xf32>
    tpu.vector_store %arg4[%c0_11, %c0_12], %22 {strides = array<i32>} : memref<2x32xf32, #tpu.memory_space<vmem>>, vector<2x32xf32>,
    %c0_13 = arith.constant 0 : index
    %c0_14 = arith.constant 0 : index
    %24 = vector.load %arg5[%c0_13, %c0_14] : memref<2x8xf32, #tpu.memory_space<vmem>>, vector<2x8xf32>
    tpu.vector_store %arg5[%c0_13, %c0_14], %17 {strides = array<i32>} : memref<2x8xf32, #tpu.memory_space<vmem>>, vector<2x8xf32>,
    return
  }
  func.func @transform_0(%arg0: i32) -> (i32, i32) {
    %c0_i32 = arith.constant 0 : i32
    %c0_i32_0 = arith.constant 0 : i32
    return %arg0, %c0_i32 : i32, i32
  }
  func.func @transform_1(%arg0: i32) -> (i32, i32, i32) {
    %c0_i32 = arith.constant 0 : i32
    %c0_i32_0 = arith.constant 0 : i32
    %c0_i32_1 = arith.constant 0 : i32
    return %arg0, %c0_i32, %c0_i32_0 : i32, i32, i32
  }
  func.func @transform_2(%arg0: i32) -> (i32, i32, i32) {
    %c0_i32 = arith.constant 0 : i32
    %c0_i32_0 = arith.constant 0 : i32
    %c0_i32_1 = arith.constant 0 : i32
    return %arg0, %c0_i32, %c0_i32_0 : i32, i32, i32
  }
  func.func @transform_3(%arg0: i32) -> (i32, i32) {
    %c0_i32 = arith.constant 0 : i32
    %c0_i32_0 = arith.constant 0 : i32
    return %arg0, %c0_i32 : i32, i32
  }
  func.func @transform_4(%arg0: i32) -> (i32, i32) {
    %c0_i32 = arith.constant 0 : i32
    %c0_i32_0 = arith.constant 0 : i32
    return %arg0, %c0_i32 : i32, i32
  }
}

</mosaic_0001>

<llo_original>
// kernel: tpu_custom_call.1
$region0: #{tpu_custom_call.1}
  #allocation0 [shape = 'u32[]', space=smem, size = 0x4, offset = 0x4, fixed_abs, tag = 'smem constant byte address 0x4 - core index']
  #allocation1 [shape = 'u32[144,128]{1,0:T(1,128)}', space=vmem, size = 0x12000, scoped, tag = 'internal scratch']
  %s0 = inlined_call_operand.hbm [shape: f32[2,32], index: 0, kind: input, shape index: {}]
  %s1 = inlined_call_operand.hbm [shape: f32[2,8,32], index: 1, kind: input, shape index: {}]
  %s2 = inlined_call_operand.hbm [shape: f32[2,8,32], index: 2, kind: input, shape index: {}]
  %s3 = inlined_call_operand.hbm [shape: f32[2,32], index: 3, kind: output, shape index: {0}]
  %s4 = inlined_call_operand.hbm [shape: f32[2,8], index: 4, kind: output, shape index: {1}]
  %5 = xla_tuple %s3, %s4
  %s6 = sld [smem:[#allocation0]]
  $region42: #{tpu_custom_call.1} parent=0
    _
  %s8 = ssub.s32 1, %s6
  %s9 = scalar_select 0, %s8, %s6
  $region1: #{tpu_custom_call.1} parent=0
    #allocation2 [shape = 'u8[1024]{0}', space=vmem, size = 0x400, scoped, tag = 'input window, operand 0, single buffered']
    #allocation3 [shape = 's32[1]{0}', space=sflag, size = 0x4, scoped, tag = 'scoped memory for tpu_custom_call.1']
    #allocation4 [shape = 's32[1]{0}', space=sflag, size = 0x4, scoped, tag = 'scoped memory for tpu_custom_call.1']
    #allocation5 [shape = 'u8[8192]{0}', space=vmem, size = 0x2000, scoped, tag = 'input window, operand 1, single buffered']
    #allocation6 [shape = 's32[1]{0}', space=sflag, size = 0x4, scoped, tag = 'scoped memory for tpu_custom_call.1']
    #allocation7 [shape = 'u8[8192]{0}', space=vmem, size = 0x2000, scoped, tag = 'input window, operand 2, single buffered']
    #allocation8 [shape = 'u8[1024]{0}', space=vmem, size = 0x400, scoped, tag = 'output window, operand 0, single buffered']
    #allocation9 [shape = 'u8[1024]{0}', space=vmem, size = 0x400, scoped, tag = 'output window, operand 1, single buffered']
    #allocation10 [shape = 's32[1]{0}', space=sflag, size = 0x4, scoped, tag = 'scoped memory for tpu_custom_call.1']
    %10 = vsyncpa [#allocation3], 0
    %11 = vsyncpa [#allocation6], 0
    %12 = vsyncpa [#allocation4], 0
    %13 = vsyncpa [#allocation10], 0
    // Predicated region
    $region2: #{tpu_custom_call.1} parent=1 // pred_check
      _
    $region3: #{tpu_custom_call.1} parent=1 // pred_check_branch
      %15 = sbr.rel (0) target = $region5
    $region4: #{tpu_custom_call.1} parent=1 // pred_region
      %s17 = ssub.s32 32, 32
      %18 = vsyncadd [#allocation3], %s17
      %s20 = sshll.u32 [#allocation2], 4
      %s21 = int_to_ptr.vmem [resolvable:$true] %s20
      %23 = dma.hbm_to_vmem [thread:$0]  %s0, 32, %s21, [#allocation3]
    $region5: #{tpu_custom_call.1} parent=1 // pred_fallthru
      _
    // Predicated region
    $region6: #{tpu_custom_call.1} parent=1 // pred_check
      _
    $region7: #{tpu_custom_call.1} parent=1 // pred_check_branch
      %25 = sbr.rel (0) target = $region9
    $region8: #{tpu_custom_call.1} parent=1 // pred_region
      %s27 = ssub.s32 256, 256
      %28 = vsyncadd [#allocation6], %s27
      %s29 = sshll.u32 [#allocation5], 4
      %s30 = int_to_ptr.vmem [resolvable:$true] %s29
      %35 = dma.hbm_to_vmem [thread:$0]  %s1, 256, %s30, [#allocation6], 128, 128, 8
    $region9: #{tpu_custom_call.1} parent=1 // pred_fallthru
      _
    // Predicated region
    $region10: #{tpu_custom_call.1} parent=1 // pred_check
      _
    $region11: #{tpu_custom_call.1} parent=1 // pred_check_branch
      %37 = sbr.rel (0) target = $region13
    $region12: #{tpu_custom_call.1} parent=1 // pred_region
      %s39 = ssub.s32 256, 256
      %40 = vsyncadd [#allocation6], %s39
      %s41 = sshll.u32 [#allocation7], 4
      %s42 = int_to_ptr.vmem [resolvable:$true] %s41
      %47 = dma.hbm_to_vmem [thread:$0]  %s2, 256, %s42, [#allocation6], 128, 128, 8
    $region13: #{tpu_custom_call.1} parent=1 // pred_fallthru
      _
    // Predicated region
    $region14: #{tpu_custom_call.1} parent=1 // pred_check
      _
    $region15: #{tpu_custom_call.1} parent=1 // pred_check_branch
      %49 = sbr.rel (0) target = $region17
    $region16: #{tpu_custom_call.1} parent=1 // pred_region
      %50 = dma.done [#allocation3], 32
    $region17: #{tpu_custom_call.1} parent=1 // pred_fallthru
      _
    // Predicated region
    $region18: #{tpu_custom_call.1} parent=1 // pred_check
      _
    $region19: #{tpu_custom_call.1} parent=1 // pred_check_branch
      %52 = sbr.rel (0) target = $region21
    $region20: #{tpu_custom_call.1} parent=1 // pred_region
      %53 = dma.done [#allocation6], 256
    $region21: #{tpu_custom_call.1} parent=1 // pred_fallthru
      _
    // Predicated region
    $region22: #{tpu_custom_call.1} parent=1 // pred_check
      _
    $region23: #{tpu_custom_call.1} parent=1 // pred_check_branch
      %55 = sbr.rel (0) target = $region25
    $region24: #{tpu_custom_call.1} parent=1 // pred_region
      %56 = dma.done [#allocation6], 256
    $region25: #{tpu_custom_call.1} parent=1 // pred_fallthru
      _
    %v57 = vld [vmem:[#allocation2] sm:$0x3]
    %v58 = vmul.f32 %v57, 5.656854
    %v59 = vld [vmem:[#allocation5] sm:$0xff]
    %v60 = vld [vmem:[#allocation5 + $0x8] sm:$0xff]
    %v63 = vunpack.c.l.s4 1966171168
    %v64 = vunpack.c.0.s8 %v63
    %v65 = vlaneseq
    %v66 = vshrl.u32 %v65, 7
    %v67 = vsub.s32 %v64, %v66
    %v68 = vrot.slane %v58, %v67
    %v69 = vcombine.high %v68, %v68
    %v71 = vunpack.c.l.s4 1966171168
    %v72 = vunpack.c.0.s8 %v71
    %v73 = vlaneseq
    %v74 = vshrl.u32 %v73, 7
    %v75 = vsub.s32 %v72, %v74
    %v76 = vrot.slane %v68, %v75
    %v78 = vunpack.c.l.s4 1966171168
    %v79 = vunpack.c.0.s8 %v78
    %v80 = vlaneseq
    %v81 = vshrl.u32 %v80, 7
    %v82 = vsub.s32 %v79, %v81
    %v83 = vrot.slane %v69, %v82
    %v84 = vlaneseq
    %v85 = vshrl.u32 %v84, 7
    %v86 = vsub.s32 0, %v85
    %v87 = vrot.slane %v76, %v86
    %v88 = vlaneseq
    %v89 = vshrl.u32 %v88, 7
    %v90 = vsub.s32 0, %v89
    %v91 = vrot.slane %v83, %v90
    %v94 = vmul.f32 %v59, %v87
    %v95 = vmul.f32 %v60, %v91
    %vm96 = vcmask 261120
    %v97 = vsel %vm96, %v94, 0.0
    %98 = vadd.xlane.f32.xlu0 %v97
    %v99 = vpop.xlane.xlu0 %98
    %v100 = vsel %vm96, %v95, 0.0
    %101 = vadd.xlane.f32.xlu0 %v100
    %v102 = vpop.xlane.xlu0 %101
    %v105 = vlaneseq
    %v106 = vand.u32 %v105, 127
    %v107 = vlaneseq
    %v108 = vshrl.u32 %v107, 7
    %v109 = vsub.s32 %v106, %v108
    %v110 = vrot.slane %v99, %v109
    %v111 = vlaneseq
    %v112 = vshrl.u32 %v111, 7
    %v113 = vsub.s32 %v106, %v112
    %v114 = vrot.slane %v102, %v113
    %vm115 = vcmask 1041409
    %v116 = vsel %vm115, %v114, %v110
    %vm118 = vcmask 58368
    %v119 = vsel %vm118, %v116, -inf
    %120 = vmax.xlane.f32.xlu0 %v119
    %v121 = vpop.xlane.xlu0 %120
    %v123 = vlaneseq
    %v124 = vshrl.u32 %v123, 7
    %v125 = vsub.s32 0, %v124
    %v126 = vrot.slane %v121, %v125
    %v127 = vlaneseq
    %v128 = vshrl.u32 %v127, 7
    %v129 = vsub.s32 1, %v128
    %v130 = vrot.slane %v121, %v129
    %v133 = vsub.f32 %v99, %v126
    %v134 = vsub.f32 %v102, %v130
    %v135 = vmul.f32 %v133, 1.442695
    %v136 = vpow.pop %v135
    %v137 = vmul.f32 %v134, 1.442695
    %v138 = vpow.pop %v137
    %141 = vset.pattern.permute.xlu0 0
    %142 = vperm.xlu0 %141, %v136
    %v143 = vpop.permute.xlu0 %142
    %144 = vset.pattern.permute.xlu0 0
    %145 = vperm.xlu0 %144, %v138
    %v146 = vpop.permute.xlu0 %145
    %v147 = vlaneseq
    %v148 = vshrl.u32 %v147, 7
    %v149 = vsub.s32 %v106, %v148
    %v150 = vrot.slane %v143, %v149
    %v151 = vlaneseq
    %v152 = vshrl.u32 %v151, 7
    %v153 = vsub.s32 %v106, %v152
    %v154 = vrot.slane %v146, %v153
    %v155 = vsel %vm115, %v154, %v150
    %v157 = vsel %vm118, %v155, 0.0
    %158 = vadd.xlane.f32.xlu0 %v157
    %v159 = vpop.xlane.xlu0 %158
    %v160 = vrcp.pop %v159
    %v162 = vlaneseq
    %v163 = vshrl.u32 %v162, 7
    %v164 = vsub.s32 0, %v163
    %v165 = vrot.slane %v160, %v164
    %v166 = vlaneseq
    %v167 = vshrl.u32 %v166, 7
    %v168 = vsub.s32 1, %v167
    %v169 = vrot.slane %v160, %v168
    %v172 = vmul.f32 %v136, %v165
    %v173 = vmul.f32 %v138, %v169
    %v174 = vld [vmem:[#allocation7] sm:$0xff]
    %v175 = vld [vmem:[#allocation7 + $0x8] sm:$0xff]
    %177 = vset.pattern.permute.xlu0 0
    %178 = vperm.xlu0 %177, %v172
    %v179 = vpop.permute.xlu0 %178
    %182 = vset.pattern.permute.xlu0 0
    %183 = vperm.xlu0 %182, %v173
    %v184 = vpop.permute.xlu0 %183
    %v186 = vmul.f32 %v174, %v179
    %v187 = vmul.f32 %v175, %v184
    %v188 = vsel %vm96, %v186, 0.0
    %v189 = vrot.slane %v188, 4
    %v190 = vadd.f32 %v188, %v189
    %v191 = vrot.slane %v190, 2
    %v192 = vadd.f32 %v190, %v191
    %v193 = vrot.slane %v192, 1
    %v194 = vadd.f32 %v192, %v193
    %v195 = vsel %vm96, %v187, 0.0
    %v196 = vrot.slane %v195, 4
    %v197 = vadd.f32 %v195, %v196
    %v198 = vrot.slane %v197, 2
    %v199 = vadd.f32 %v197, %v198
    %v200 = vrot.slane %v199, 1
    %v201 = vadd.f32 %v199, %v200
    %v204 = vsel %vm115, %v201, %v194
    %vm206 = vcmask 254976
    %207 = vst.msk [vmem:[#allocation8] sm:$0x3] %vm206, %v204
    %v208 = vlaneseq
    %v209 = vshrl.u32 %v208, 7
    %v210 = vsub.s32 %v106, %v209
    %v211 = vrot.slane %v179, %v210
    %v212 = vlaneseq
    %v213 = vshrl.u32 %v212, 7
    %v214 = vsub.s32 %v106, %v213
    %v215 = vrot.slane %v184, %v214
    %v216 = vsel %vm115, %v215, %v211
    %218 = vst.msk [vmem:[#allocation9] sm:$0x3] %vm118, %v216
    // Predicated region
    $region26: #{tpu_custom_call.1} parent=1 // pred_check
      _
    $region27: #{tpu_custom_call.1} parent=1 // pred_check_branch
      %220 = sbr.rel (0) target = $region29
    $region28: #{tpu_custom_call.1} parent=1 // pred_region
      %s222 = ssub.s32 32, 32
      %223 = vsyncadd [#allocation4], %s222
      %s225 = sshll.u32 [#allocation8], 4
      %s226 = int_to_ptr.vmem [resolvable:$true] %s225
      %228 = dma.vmem_to_hbm [thread:$0]  %s226, 32, %s3, [#allocation4]
    $region29: #{tpu_custom_call.1} parent=1 // pred_fallthru
      _
    // Predicated region
    $region30: #{tpu_custom_call.1} parent=1 // pred_check
      _
    $region31: #{tpu_custom_call.1} parent=1 // pred_check_branch
      %230 = sbr.rel (0) target = $region33
    $region32: #{tpu_custom_call.1} parent=1 // pred_region
      %s232 = ssub.s32 32, 32
      %233 = vsyncadd [#allocation10], %s232
      %s235 = sshll.u32 [#allocation9], 4
      %s236 = int_to_ptr.vmem [resolvable:$true] %s235
      %238 = dma.vmem_to_hbm [thread:$0]  %s236, 32, %s4, [#allocation10]
    $region33: #{tpu_custom_call.1} parent=1 // pred_fallthru
      _
    // Predicated region
    $region34: #{tpu_custom_call.1} parent=1 // pred_check
      _
    $region35: #{tpu_custom_call.1} parent=1 // pred_check_branch
      %240 = sbr.rel (0) target = $region37
    $region36: #{tpu_custom_call.1} parent=1 // pred_region
      %241 = dma.done [#allocation4], 32
    $region37: #{tpu_custom_call.1} parent=1 // pred_fallthru
      _
    // Predicated region
    $region38: #{tpu_custom_call.1} parent=1 // pred_check
      _
    $region39: #{tpu_custom_call.1} parent=1 // pred_check_branch
      %243 = sbr.rel (0) target = $region41
    $region40: #{tpu_custom_call.1} parent=1 // pred_region
      %244 = dma.done [#allocation10], 32
    $region41: #{tpu_custom_call.1} parent=1 // pred_fallthru
      _
    %245 = vsyncpa [#allocation3], 1
    %246 = vsyncpa [#allocation6], 1
    %247 = vsyncpa [#allocation4], 1
    %248 = vsyncpa [#allocation10], 1

</llo_original>
